<compile_context>
chip_gen: v7x
topology: tpu7x:2x2x1
jax: 0.10.0
libtpu: 0.0.40
codegen_flags: <defaults>
</compile_context>

<pallas_src>
import jax
import jax.numpy as jnp
from jax import lax
from jax.experimental import pallas as pl
from jax.experimental.pallas import tpu as pltpu

_LANE = 128      # lane width of a vreg
_SUBLANE = 8     # sublane count of a vreg


def _round_up(x, m):
    return ((x + m - 1) // m) * m


def _mlp_kernel(x_ref, w1_ref, b1_ref, w2_ref, b2_ref, o_ref):
    """One batch tile of:  q = W2 @ ReLU(x @ W1^T + b1)^T + b2   (batch on lanes).

    Weights stay in PyTorch (out, in) layout; both matmuls contract on the last
    axis of both operands, so no transposes are materialized anywhere.
    """
    compute_dtype = w1_ref.dtype
    # int32 state -> compute dtype in a single cast (bf16 exact for |state| <= 256).
    x = x_ref[...].astype(compute_dtype)

    # Layer 1: (tb, S) x (H, S), contract on S -> (tb, H); f32 accumulate + f32 bias.
    h = lax.dot_general(
        x, w1_ref[...],
        dimension_numbers=(((1,), (1,)), ((), ())),
        preferred_element_type=jnp.float32,
    )
    h = jnp.maximum(h + b1_ref[...], 0.0).astype(compute_dtype)

    # Layer 2, transposed so the batch stays on the lane axis:
    # (A_pad, H) x (tb, H), contract on H -> (A_pad, tb); lane-dense store.
    q = lax.dot_general(
        w2_ref[...], h,
        dimension_numbers=(((1,), (1,)), ((), ())),
        preferred_element_type=jnp.float32,
    )
    o_ref[...] = (q + b2_ref[...]).astype(o_ref.dtype)


def prepare_params(w1, b1, w2, b2, compute_dtype=jnp.bfloat16):
    """One-time parameter prep (NOT on the per-call path).

    * keeps the PyTorch (out, in) weight layout (no transposes),
    * pads n_action up to an 8-sublane multiple (NOT 128 lanes),
    * biases stay f32: b1 as a (1, H) row, b2 as an (A_pad, 1) column
      (added after the f32 accumulate).
    """
    hidden_dim, state_dim = w1.shape
    n_action = w2.shape[0]
    a_pad = max(_SUBLANE, _round_up(n_action, _SUBLANE))

    w2_p = jnp.zeros((a_pad, hidden_dim), jnp.float32).at[:n_action].set(w2)
    b2_p = jnp.zeros((a_pad,), jnp.float32).at[:n_action].set(b2)

    return {
        "w1": w1.astype(compute_dtype),                        # (H, S)
        "b1": b1.reshape(1, hidden_dim).astype(jnp.float32),   # (1, H)
        "w2": w2_p.astype(compute_dtype),                      # (A_pad, H)
        "b2": b2_p.reshape(a_pad, 1).astype(jnp.float32),      # (A_pad, 1)
        "n_action": n_action,
        "a_pad": a_pad,
    }


def _choose_batch_tiling(B, block_b):
    """Pick (tile_rows, num_tiles) for the batch axis (batch-on-lanes layout).

    * B <= block_b: one full-array block (any B; no padding, no edge masking).
    * B  > block_b: lane-aligned tiles; prefer an even tile count (v7x has two
      TensorCores) when it does not increase the padded extent.  A ragged last
      tile is handled by Pallas edge masking -- no jnp.pad wrapper pass.
    """
    if B <= block_b:
        return B, 1
    block_b = max(_LANE, (block_b // _LANE) * _LANE)
    tb = block_b
    n = -(-B // tb)                                   # cdiv
    if n > 1 and n % 2:
        tb_even = _round_up(-(-B // (n + 1)), _LANE)
        n_even = -(-B // tb_even)
        if n_even % 2 == 0 and n_even * tb_even <= n * tb:
            tb, n = tb_even, n_even
    return tb, n


def mlp_agent_forward(state, params, *, block_b=1024,
                      out_dtype=jnp.float32, transposed_output=False):
    """state: (B, state_dim) int32; params: output of prepare_params().

    Returns (B, n_action) by default; with transposed_output=True returns the
    (n_action, B) batch-on-lanes layout with no wrapper transpose pass.
    """
    w1, b1, w2, b2 = params["w1"], params["b1"], params["w2"], params["b2"]
    n_action, a_pad = params["n_action"], params["a_pad"]
    hidden_dim, state_dim = w1.shape
    B = state.shape[0]

    tb, n_tiles = _choose_batch_tiling(B, block_b)

    out = pl.pallas_call(
        _mlp_kernel,
        out_shape=jax.ShapeDtypeStruct((a_pad, B), out_dtype),
        grid=(n_tiles,),
        in_specs=[
            pl.BlockSpec((tb, state_dim), lambda i: (i, 0)),          # state tile
            pl.BlockSpec((hidden_dim, state_dim), lambda i: (0, 0)),  # W1 (resident)
            pl.BlockSpec((1, hidden_dim), lambda i: (0, 0)),          # b1 (resident)
            pl.BlockSpec((a_pad, hidden_dim), lambda i: (0, 0)),      # W2 (resident)
            pl.BlockSpec((a_pad, 1), lambda i: (0, 0)),               # b2 (resident)
        ],
        out_specs=pl.BlockSpec((a_pad, tb), lambda i: (0, i)),
        compiler_params=pltpu.CompilerParams(
            dimension_semantics=("parallel",),   # batch axis: shards across TCs on v7x
        ),
    )(state, w1, b1, w2, b2)

    q = out[:n_action]            # (n_action, B): tiny row trim (a_pad is only 8)
    if transposed_output:
        return q                  # batch-on-lanes fast path, no transpose pass
    return q.T                    # PyTorch layout (B, n_action)


def _reference(state, w1, b1, w2, b2):
    x = state.astype(jnp.float32)
    h = jnp.maximum(x @ w1.T + b1, 0.0)
    return h @ w2.T + b2


if __name__ == "__main__":
    B, state_dim, hidden_dim, n_action = 8, 16, 32, 4

    key = jax.random.PRNGKey(0)
    k_s, k_w1, k_b1, k_w2, k_b2, k_s2, k_s3 = jax.random.split(key, 7)

    # Deterministic synthetic parameters (PyTorch nn.Linear shapes: (out, in)).
    state = jax.random.randint(k_s, (B, state_dim), minval=-5, maxval=6, dtype=jnp.int32)
    w1 = jax.random.normal(k_w1, (hidden_dim, state_dim), jnp.float32) * 0.1
    b1 = jax.random.normal(k_b1, (hidden_dim,), jnp.float32) * 0.1
    w2 = jax.random.normal(k_w2, (n_action, hidden_dim), jnp.float32) * 0.1
    b2 = jax.random.normal(k_b2, (n_action,), jnp.float32) * 0.1

    ref = _reference(state, w1, b1, w2, b2)

    # 1) f32 weights: exact path.
    params_f32 = prepare_params(w1, b1, w2, b2, compute_dtype=jnp.float32)
    out = jax.block_until_ready(mlp_agent_forward(state, params_f32))
    assert out.shape == (B, n_action)
    assert jnp.allclose(out, ref, atol=1e-5, rtol=1e-5), "f32 mismatch vs reference"

    # 2) bf16 weights (default, all TPU generations) with f32 accumulation.
    params_bf16 = prepare_params(w1, b1, w2, b2)
    out_bf16 = jax.block_until_ready(mlp_agent_forward(state, params_bf16))
    assert jnp.allclose(out_bf16, ref, atol=1.5e-1, rtol=5e-2), "bf16 mismatch vs reference"

    # 3) bf16 output writeback (halves output bytes again) on top of bf16 weights.
    out_bf16o = jax.block_until_ready(
        mlp_agent_forward(state, params_bf16, out_dtype=jnp.bfloat16))
    assert out_bf16o.dtype == jnp.bfloat16
    assert jnp.allclose(out_bf16o.astype(jnp.float32), ref, atol=2e-1, rtol=5e-2), \
        "bf16-out mismatch vs reference"

    # 4) Transposed fast path: (n_action, B), no wrapper transpose pass.
    out_t = jax.block_until_ready(
        mlp_agent_forward(state, params_f32, transposed_output=True))
    assert out_t.shape == (n_action, B)
    assert jnp.allclose(out_t.T, ref, atol=1e-5, rtol=1e-5), "transposed mismatch"

    # 5) Odd batch as a single full-array block: no padding, no masking.
    B2 = 300
    state2 = jax.random.randint(k_s2, (B2, state_dim), minval=-5, maxval=6, dtype=jnp.int32)
    ref2 = _reference(state2, w1, b1, w2, b2)
    out2 = jax.block_until_ready(mlp_agent_forward(state2, params_f32))
    assert out2.shape == (B2, n_action)
    assert jnp.allclose(out2, ref2, atol=1e-5, rtol=1e-5), "single-block odd-B mismatch"

    # 6) Multi-tile grid with a ragged last tile (Pallas edge masking, no jnp.pad):
    #    B=300, block_b=128 -> 3 tiles of 128, last tile partially out of bounds.
    out3 = jax.block_until_ready(mlp_agent_forward(state2, params_f32, block_b=128))
    assert jnp.allclose(out3, ref2, atol=1e-5, rtol=1e-5), "ragged-tile mismatch"

    # 7) Multi-tile, evenly dividing, even tile count (balances v7x's 2 TCs).
    B3 = 512
    state3 = jax.random.randint(k_s3, (B3, state_dim), minval=-5, maxval=6, dtype=jnp.int32)
    ref3 = _reference(state3, w1, b1, w2, b2)
    out4 = jax.block_until_ready(mlp_agent_forward(state3, params_f32, block_b=128))
    assert jnp.allclose(out4, ref3, atol=1e-5, rtol=1e-5), "multi-tile mismatch"

    print("KERNEL_OK")
</pallas_src>

<mosaic_0001>
module attributes {stable_mosaic.version = 11 : i64} {
  func.func @_mlp_kernel(%arg0: i32, %arg1: memref<8x16xi32, #tpu.memory_space<vmem>>, %arg2: memref<32x16xf32, #tpu.memory_space<vmem>>, %arg3: memref<1x32xf32, #tpu.memory_space<vmem>>, %arg4: memref<8x32xf32, #tpu.memory_space<vmem>>, %arg5: memref<8x1xf32, #tpu.memory_space<vmem>>, %arg6: memref<8x8xf32, #tpu.memory_space<vmem>>) attributes {dimension_semantics = [#tpu.dimension_semantics<parallel>], iteration_bounds = array<i64: 1>, scalar_prefetch = 0 : i64, scratch_operands = 0 : i64, tpu.core_type = #tpu.core_type<tc>, window_params = [{transform_indices = @transform_0, window_bounds = array<i64: 8, 16>}, {pipeline_mode = #tpu.pipeline_mode<synchronous>, transform_indices = @transform_1, window_bounds = array<i64: 32, 16>}, {pipeline_mode = #tpu.pipeline_mode<synchronous>, transform_indices = @transform_2, window_bounds = array<i64: 1, 32>}, {pipeline_mode = #tpu.pipeline_mode<synchronous>, transform_indices = @transform_3, window_bounds = array<i64: 8, 32>}, {pipeline_mode = #tpu.pipeline_mode<synchronous>, transform_indices = @transform_4, window_bounds = array<i64: 8, 1>}, {transform_indices = @transform_5, window_bounds = array<i64: 8, 8>}]} {
    %c0 = arith.constant 0 : index
    %c0_0 = arith.constant 0 : index
    %0 = vector.load %arg1[%c0, %c0_0] : memref<8x16xi32, #tpu.memory_space<vmem>>, vector<8x16xi32>
    %1 = arith.sitofp %0 : vector<8x16xi32> to vector<8x16xf32>
    %c0_1 = arith.constant 0 : index
    %c0_2 = arith.constant 0 : index
    %2 = vector.load %arg2[%c0_1, %c0_2] : memref<32x16xf32, #tpu.memory_space<vmem>>, vector<32x16xf32>
    %cst = arith.constant dense<0.000000e+00> : vector<8x32xf32>
    %3 = tpu.matmul %1, %2, %cst {dimension_numbers = #tpu.dot_dimension_numbers<[1], [1], [0], [0], [0, 0, 1, 0], [], []>} : vector<8x16xf32>, vector<32x16xf32>, vector<8x32xf32> -> vector<8x32xf32>
    %c0_3 = arith.constant 0 : index
    %c0_4 = arith.constant 0 : index
    %4 = vector.load %arg3[%c0_3, %c0_4] : memref<1x32xf32, #tpu.memory_space<vmem>>, vector<1x32xf32>
    %5 = vector.broadcast %4 : vector<1x32xf32> to vector<8x32xf32>
    %6 = arith.addf %3, %5 : vector<8x32xf32>
    %cst_5 = arith.constant 0.000000e+00 : f32
    %7 = vector.broadcast %cst_5 : f32 to vector<8x32xf32>
    %8 = arith.maximumf %6, %7 : vector<8x32xf32>
    %c0_6 = arith.constant 0 : index
    %c0_7 = arith.constant 0 : index
    %9 = vector.load %arg4[%c0_6, %c0_7] : memref<8x32xf32, #tpu.memory_space<vmem>>, vector<8x32xf32>
    %cst_8 = arith.constant dense<0.000000e+00> : vector<8x8xf32>
    %10 = tpu.matmul %9, %8, %cst_8 {dimension_numbers = #tpu.dot_dimension_numbers<[1], [1], [0], [0], [0, 0, 1, 0], [], []>} : vector<8x32xf32>, vector<8x32xf32>, vector<8x8xf32> -> vector<8x8xf32>
    %c0_9 = arith.constant 0 : index
    %c0_10 = arith.constant 0 : index
    %11 = vector.load %arg5[%c0_9, %c0_10] : memref<8x1xf32, #tpu.memory_space<vmem>>, vector<8x1xf32>
    %12 = vector.broadcast %11 : vector<8x1xf32> to vector<8x8xf32>
    %13 = arith.addf %10, %12 : vector<8x8xf32>
    %c0_11 = arith.constant 0 : index
    %c0_12 = arith.constant 0 : index
    %14 = vector.load %arg6[%c0_11, %c0_12] : memref<8x8xf32, #tpu.memory_space<vmem>>, vector<8x8xf32>
    tpu.vector_store %arg6[%c0_11, %c0_12], %13 {strides = array<i32>} : memref<8x8xf32, #tpu.memory_space<vmem>>, vector<8x8xf32>,
    return
  }
  func.func @transform_0(%arg0: i32) -> (i32, i32) {
    %c0_i32 = arith.constant 0 : i32
    %c0_i32_0 = arith.constant 0 : i32
    return %arg0, %c0_i32 : i32, i32
  }
  func.func @transform_1(%arg0: i32) -> (i32, i32) {
    %c0_i32 = arith.constant 0 : i32
    %c0_i32_0 = arith.constant 0 : i32
    %c0_i32_1 = arith.constant 0 : i32
    return %c0_i32, %c0_i32_0 : i32, i32
  }
  func.func @transform_2(%arg0: i32) -> (i32, i32) {
    %c0_i32 = arith.constant 0 : i32
    %c0_i32_0 = arith.constant 0 : i32
    %c0_i32_1 = arith.constant 0 : i32
    return %c0_i32, %c0_i32_0 : i32, i32
  }
  func.func @transform_3(%arg0: i32) -> (i32, i32) {
    %c0_i32 = arith.constant 0 : i32
    %c0_i32_0 = arith.constant 0 : i32
    %c0_i32_1 = arith.constant 0 : i32
    return %c0_i32, %c0_i32_0 : i32, i32
  }
  func.func @transform_4(%arg0: i32) -> (i32, i32) {
    %c0_i32 = arith.constant 0 : i32
    %c0_i32_0 = arith.constant 0 : i32
    %c0_i32_1 = arith.constant 0 : i32
    return %c0_i32, %c0_i32_0 : i32, i32
  }
  func.func @transform_5(%arg0: i32) -> (i32, i32) {
    %c0_i32 = arith.constant 0 : i32
    %c0_i32_0 = arith.constant 0 : i32
    return %c0_i32, %arg0 : i32, i32
  }
}

</mosaic_0001>

<llo_original>
// kernel: tpu_custom_call.1
$region0: #{tpu_custom_call.1}
  #allocation0 [shape = 'u32[]', space=smem, size = 0x4, offset = 0x4, fixed_abs, tag = 'smem constant byte address 0x4 - core index']
  #allocation1 [shape = 'u32[144,128]{1,0:T(1,128)}', space=vmem, size = 0x12000, scoped, tag = 'internal scratch']
  %s0 = inlined_call_operand.vmem [shape: s32[8,16], index: 0, kind: input, shape index: {}]
  %s1 = inlined_call_operand.vmem [shape: f32[32,16], index: 1, kind: input, shape index: {}]
  %s2 = inlined_call_operand.vmem [shape: f32[1,32], index: 2, kind: input, shape index: {}]
  %s3 = inlined_call_operand.vmem [shape: f32[8,32], index: 3, kind: input, shape index: {}]
  %s4 = inlined_call_operand.vmem [shape: f32[8,1], index: 4, kind: input, shape index: {}]
  %s5 = inlined_call_operand.hbm [shape: f32[8,8], index: 5, kind: output, shape index: {}]
  %s6 = sld [smem:[#allocation0]]
  $region30: #{tpu_custom_call.1} parent=0
    _
  %s8 = ssub.s32 1, %s6
  %s9 = scalar_select 0, %s8, %s6
  $region1: #{tpu_custom_call.1} parent=0
    #allocation2 [shape = 'u8[4096]{0}', space=vmem, size = 0x1000, scoped, tag = 'output window, operand 0, single buffered']
    #allocation3 [shape = 's32[1]{0}', space=sflag, size = 0x4, scoped, tag = 'scoped memory for tpu_custom_call.1']
    %10 = vsyncpa [#allocation3], 0
    // Predicated region
    $region2: #{tpu_custom_call.1} parent=1 // pred_check
      _
    $region3: #{tpu_custom_call.1} parent=1 // pred_check_branch
      %12 = sbr.rel (0) target = $region5
    $region4: #{tpu_custom_call.1} parent=1 // pred_region
      _
    $region5: #{tpu_custom_call.1} parent=1 // pred_fallthru
      _
    // Predicated region
    $region6: #{tpu_custom_call.1} parent=1 // pred_check
      _
    $region7: #{tpu_custom_call.1} parent=1 // pred_check_branch
      %14 = sbr.rel (0) target = $region9
    $region8: #{tpu_custom_call.1} parent=1 // pred_region
      _
    $region9: #{tpu_custom_call.1} parent=1 // pred_fallthru
      _
    // Predicated region
    $region10: #{tpu_custom_call.1} parent=1 // pred_check
      _
    $region11: #{tpu_custom_call.1} parent=1 // pred_check_branch
      %16 = sbr.rel (0) target = $region13
    $region12: #{tpu_custom_call.1} parent=1 // pred_region
      _
    $region13: #{tpu_custom_call.1} parent=1 // pred_fallthru
      _
    // Predicated region
    $region14: #{tpu_custom_call.1} parent=1 // pred_check
      _
    $region15: #{tpu_custom_call.1} parent=1 // pred_check_branch
      %18 = sbr.rel (0) target = $region17
    $region16: #{tpu_custom_call.1} parent=1 // pred_region
      _
    $region17: #{tpu_custom_call.1} parent=1 // pred_fallthru
      _
    // Predicated region
    $region18: #{tpu_custom_call.1} parent=1 // pred_check
      _
    $region19: #{tpu_custom_call.1} parent=1 // pred_check_branch
      %20 = sbr.rel (0) target = $region21
    $region20: #{tpu_custom_call.1} parent=1 // pred_region
      _
    $region21: #{tpu_custom_call.1} parent=1 // pred_fallthru
      _
    %v21 = vld [vmem:[%s0] sm:$0xff]
    %v22 = vcvt.s32.f32 %v21
    %v23 = vld [vmem:[%s1] sm:$0xff]
    %v24 = vld [vmem:[%s1 + $0x8] sm:$0xff]
    %v25 = vld [vmem:[%s1 + $0x10] sm:$0xff]
    %v26 = vld [vmem:[%s1 + $0x18] sm:$0xff]
    %v27 = vld [vmem:[%s2] sm:$0x1]
    %v29 = vlaneseq
    %v30 = vshrl.u32 %v29, 7
    %v31 = vsub.s32 0, %v30
    %v32 = vrot.slane %v27, %v31
    %vm34 = vcmask 130048
    %v36 = vsel %vm34, %v22, 0
    %v39 = vsel %vm34, %v23, 0
    %v42 = vsel %vm34, %v24, 0
    %v45 = vsel %vm34, %v25, 0
    %v48 = vsel %vm34, %v26, 0
    %50 = vmatprep.subr.mxu0 0.0
    %51 = vmatpush1.xpose.msra.mxu0 %v39
    %52 = vmatprep.subr.mxu0 0.0
    %53 = vmatpush1.xpose.msra.mxu0 %v42
    %54 = vmatprep.subr.mxu0 0.0
    %55 = vmatpush1.xpose.msra.mxu0 %v45
    %56 = vmatprep.subr.mxu0 0.0
    %57 = vmatpush1.xpose.msra.mxu0 %v48
    %58 = vmatprep.subr.mxu0 0.0
    %59 = vmatpush1.xpose.msra.mxu0 0.0
    %60 = vmatprep.subr.mxu0 0.0
    %61 = vmatpush1.xpose.msra.mxu0 0.0
    %62 = vmatprep.subr.mxu0 0.0
    %63 = vmatpush1.xpose.msra.mxu0 0.0
    %64 = vmatprep.subr.mxu0 0.0
    %65 = vmatpush1.xpose.msra.mxu0 0.0
    %66 = vmatprep.subr.mxu0 0.0
    %67 = vmatpush1.xpose.msra.mxu0 0.0
    %68 = vmatprep.subr.mxu0 0.0
    %69 = vmatpush1.xpose.msra.mxu0 0.0
    %70 = vmatprep.subr.mxu0 0.0
    %71 = vmatpush1.xpose.msra.mxu0 0.0
    %72 = vmatprep.subr.mxu0 0.0
    %73 = vmatpush1.xpose.msra.mxu0 0.0
    %74 = vmatprep.subr.mxu0 0.0
    %75 = vmatpush1.xpose.msra.mxu0 0.0
    %76 = vmatprep.subr.mxu0 0.0
    %77 = vmatpush1.xpose.msra.mxu0 0.0
    %78 = vmatprep.subr.mxu0 0.0
    %79 = vmatpush1.xpose.msra.mxu0 0.0
    %80 = vmatprep.subr.mxu0 0.0
    %81 = vmatpush1.xpose.msra.mxu0 0.0
    %82 = vmatprep.subr.mxu0 0.0
    %83 = vmatpush1.xpose.msra.mxu0 0.0
    %84 = vmatprep.subr.mxu0 0.0
    %85 = vmatpush1.xpose.msra.mxu0 0.0
    %86 = vmatprep.subr.mxu0 0.0
    %87 = vmatpush1.xpose.msra.mxu0 0.0
    %88 = vmatprep.subr.mxu0 0.0
    %89 = vmatpush1.xpose.msra.mxu0 0.0
    %90 = vmatprep.subr.mxu0 0.0
    %91 = vmatpush1.xpose.msra.mxu0 0.0
    %92 = vmatprep.subr.mxu0 0.0
    %93 = vmatpush1.xpose.msra.mxu0 0.0
    %94 = vmatprep.subr.mxu0 0.0
    %95 = vmatpush1.xpose.msra.mxu0 0.0
    %96 = vmatprep.subr.mxu0 0.0
    %97 = vmatpush1.xpose.msra.mxu0 0.0
    %98 = vmatprep.subr.mxu0 0.0
    %99 = vmatpush1.xpose.msra.mxu0 0.0
    %100 = vmatprep.subr.mxu0 0.0
    %101 = vmatpush1.xpose.msra.mxu0 0.0
    %102 = vmatprep.subr.mxu0 0.0
    %103 = vmatpush1.xpose.msra.mxu0 0.0
    %104 = vmatprep.subr.mxu0 0.0
    %105 = vmatpush1.xpose.msra.mxu0 0.0
    %106 = vmatprep.subr.mxu0 0.0
    %107 = vmatpush1.xpose.msra.mxu0 0.0
    %108 = vmatprep.subr.mxu0 0.0
    %109 = vmatpush1.xpose.msra.mxu0 0.0
    %110 = vmatprep.subr.mxu0 0.0
    %111 = vmatpush1.xpose.msra.mxu0 0.0
    %112 = vmatprep.subr.mxu0 0.0
    %113 = vmatpush1.xpose.msra.mxu0 0.0
    %114 = vmatprep.mubr.f32.mxu0 0.0
    %115 = vmatmul.mubr.f32.gmra.mrb[0].mxu0 %v36
    %v116 = vpop.f32.mrb[0].mxu0
    %v117 = vadd.f32 %v32, %v116
    %v118 = vpop.f32.mrb[0].mxu0
    %119 = vdwg.mxu0
    %v120 = vmax.f32 %v117, 0.0
    %v121 = vld [vmem:[%s3] sm:$0xff]
    %v122 = vld [vmem:[%s4] sm:$0xff]
    %124 = vset.pattern.permute.xlu0 0
    %125 = vperm.xlu0 %124, %v122
    %v126 = vpop.permute.xlu0 %125
    %vm128 = vcmask 261120
    %v130 = vsel %vm128, %v121, 0
    %v133 = vsel %vm128, %v120, 0
    %135 = vmatprep.subr.mxu0 0.0
    %136 = vmatpush1.xpose.msra.mxu0 %v133
    %137 = vmatprep.subr.mxu0 0.0
    %138 = vmatpush1.xpose.msra.mxu0 0.0
    %139 = vmatprep.subr.mxu0 0.0
    %140 = vmatpush1.xpose.msra.mxu0 0.0
    %141 = vmatprep.subr.mxu0 0.0
    %142 = vmatpush1.xpose.msra.mxu0 0.0
    %143 = vmatprep.subr.mxu0 0.0
    %144 = vmatpush1.xpose.msra.mxu0 0.0
    %145 = vmatprep.subr.mxu0 0.0
    %146 = vmatpush1.xpose.msra.mxu0 0.0
    %147 = vmatprep.subr.mxu0 0.0
    %148 = vmatpush1.xpose.msra.mxu0 0.0
    %149 = vmatprep.subr.mxu0 0.0
    %150 = vmatpush1.xpose.msra.mxu0 0.0
    %151 = vmatprep.subr.mxu0 0.0
    %152 = vmatpush1.xpose.msra.mxu0 0.0
    %153 = vmatprep.subr.mxu0 0.0
    %154 = vmatpush1.xpose.msra.mxu0 0.0
    %155 = vmatprep.subr.mxu0 0.0
    %156 = vmatpush1.xpose.msra.mxu0 0.0
    %157 = vmatprep.subr.mxu0 0.0
    %158 = vmatpush1.xpose.msra.mxu0 0.0
    %159 = vmatprep.subr.mxu0 0.0
    %160 = vmatpush1.xpose.msra.mxu0 0.0
    %161 = vmatprep.subr.mxu0 0.0
    %162 = vmatpush1.xpose.msra.mxu0 0.0
    %163 = vmatprep.subr.mxu0 0.0
    %164 = vmatpush1.xpose.msra.mxu0 0.0
    %165 = vmatprep.subr.mxu0 0.0
    %166 = vmatpush1.xpose.msra.mxu0 0.0
    %167 = vmatprep.subr.mxu0 0.0
    %168 = vmatpush1.xpose.msra.mxu0 0.0
    %169 = vmatprep.subr.mxu0 0.0
    %170 = vmatpush1.xpose.msra.mxu0 0.0
    %171 = vmatprep.subr.mxu0 0.0
    %172 = vmatpush1.xpose.msra.mxu0 0.0
    %173 = vmatprep.subr.mxu0 0.0
    %174 = vmatpush1.xpose.msra.mxu0 0.0
    %175 = vmatprep.subr.mxu0 0.0
    %176 = vmatpush1.xpose.msra.mxu0 0.0
    %177 = vmatprep.subr.mxu0 0.0
    %178 = vmatpush1.xpose.msra.mxu0 0.0
    %179 = vmatprep.subr.mxu0 0.0
    %180 = vmatpush1.xpose.msra.mxu0 0.0
    %181 = vmatprep.subr.mxu0 0.0
    %182 = vmatpush1.xpose.msra.mxu0 0.0
    %183 = vmatprep.subr.mxu0 0.0
    %184 = vmatpush1.xpose.msra.mxu0 0.0
    %185 = vmatprep.subr.mxu0 0.0
    %186 = vmatpush1.xpose.msra.mxu0 0.0
    %187 = vmatprep.subr.mxu0 0.0
    %188 = vmatpush1.xpose.msra.mxu0 0.0
    %189 = vmatprep.subr.mxu0 0.0
    %190 = vmatpush1.xpose.msra.mxu0 0.0
    %191 = vmatprep.subr.mxu0 0.0
    %192 = vmatpush1.xpose.msra.mxu0 0.0
    %193 = vmatprep.subr.mxu0 0.0
    %194 = vmatpush1.xpose.msra.mxu0 0.0
    %195 = vmatprep.subr.mxu0 0.0
    %196 = vmatpush1.xpose.msra.mxu0 0.0
    %197 = vmatprep.subr.mxu0 0.0
    %198 = vmatpush1.xpose.msra.mxu0 0.0
    %199 = vmatprep.mubr.f32.mxu0 0.0
    %200 = vmatmul.mubr.f32.gmra.mrb[0].mxu0 %v130
    %v201 = vpop.f32.mrb[0].mxu0
    %v202 = vadd.f32 %v126, %v201
    %v203 = vpop.f32.mrb[0].mxu0
    %204 = vdwg.mxu0
    %vm205 = vcmask 64512
    %206 = vst.msk [vmem:[#allocation2] sm:$0xff] %vm205, %v202
    // Predicated region
    $region22: #{tpu_custom_call.1} parent=1 // pred_check
      _
    $region23: #{tpu_custom_call.1} parent=1 // pred_check_branch
      %208 = sbr.rel (0) target = $region25
    $region24: #{tpu_custom_call.1} parent=1 // pred_region
      %s210 = ssub.s32 128, 128
      %211 = vsyncadd [#allocation3], %s210
      %s213 = sshll.u32 [#allocation2], 4
      %s214 = int_to_ptr.vmem [resolvable:$true] %s213
      %216 = dma.vmem_to_hbm [thread:$0]  %s214, 128, %s5, [#allocation3]
    $region25: #{tpu_custom_call.1} parent=1 // pred_fallthru
      _
    // Predicated region
    $region26: #{tpu_custom_call.1} parent=1 // pred_check
      _
    $region27: #{tpu_custom_call.1} parent=1 // pred_check_branch
      %218 = sbr.rel (0) target = $region29
    $region28: #{tpu_custom_call.1} parent=1 // pred_region
      %219 = dma.done [#allocation3], 128
    $region29: #{tpu_custom_call.1} parent=1 // pred_fallthru
      _
    %220 = vsyncpa [#allocation3], 1

</llo_original>
